<compile_context>
chip_gen: v6e
topology: v6e:2x2x1
jax: 0.10.0
libtpu: 0.0.40
codegen_flags: <defaults>
</compile_context>

<pallas_src>
import functools

import numpy as np
import jax
import jax.numpy as jnp
from jax.experimental import pallas as pl
from jax.experimental.pallas import tpu as pltpu


def _round_up(v, m):
    return (v + m - 1) // m * m


def _double_conv_kernel(x_ref, w1_ref, w2_ref, o_ref, stacked_ref, *,
                        H, W, Nb, Cin_p, C1_p, Cout, k, residual, eps=1e-5):
    HW = H * W
    KK = k * k
    half = k // 2
    offs = tuple(range(-half, half + 1))

    # Edge masks hoisted out of the tap loops and shared by both convs.
    # (JAX does not CSE the compare/broadcast, so do it exactly once.)
    masks = {}
    if half > 0:
        col = jax.lax.broadcasted_iota(jnp.int32, (1, HW), 1) % W
        for dx in offs:
            if dx < 0:                      # keep columns j >= -dx
                masks[dx] = col >= -dx
            elif dx > 0:                    # keep columns j <= W-1-dx
                masks[dx] = col <= (W - 1 - dx)

    def build_stacked(h, c, s):
        """Write the KK shifted/masked taps of sample s into stacked_ref.

        Row block t*c:(t+1)*c holds tap t, lane block s*HW:(s+1)*HW holds
        sample s (HW is a multiple of 128 -> lane-aligned static slices).
        """
        if half == 0:
            stacked_ref[0:c, s * HW:(s + 1) * HW] = h
            return
        pad = jnp.zeros((c, half * (W + 1)), jnp.float32)
        hp = jnp.concatenate([pad, h, pad], axis=1)          # zero-padded slab
        base = half * (W + 1)
        t = 0
        for dy in offs:                                      # static unroll: k*k taps
            for dx in offs:
                d = dy * W + dx
                # out[:, p] = h[:, p + d] with zero fill at image top/bottom.
                piece = hp[:, base + d: base + d + HW]
                if dx in masks:
                    piece = jnp.where(masks[dx], piece, 0.0)
                stacked_ref[t * c:(t + 1) * c, s * HW:(s + 1) * HW] = piece
                t += 1

    def instnorm_relu(h):
        # InstanceNorm2d(affine=False): per-channel stats over the spatial lanes.
        mean = jnp.mean(h, axis=1, keepdims=True)
        cen = h - mean
        var = jnp.mean(cen * cen, axis=1, keepdims=True)
        return jnp.maximum(cen * jax.lax.rsqrt(var + eps), 0.0)

    # ---- conv1: one folded matmul over all Nb samples (bias is a no-op) ------
    for s in range(Nb):
        build_stacked(x_ref[s], Cin_p, s)
    h1 = jnp.dot(w1_ref[...], stacked_ref[:KK * Cin_p, :],
                 preferred_element_type=jnp.float32)          # (C1_p, Nb*HW)

    h1s = [instnorm_relu(h1[:, s * HW:(s + 1) * HW]) for s in range(Nb)]

    # TODO(synk): nn.Dropout(0.5) is identity in eval mode; training-mode
    # stochastic dropout is intentionally not modeled here.

    # ---- conv2 ---------------------------------------------------------------
    for s in range(Nb):
        build_stacked(h1s[s], C1_p, s)
    h2 = jnp.dot(w2_ref[...], stacked_ref[:KK * C1_p, :],
                 preferred_element_type=jnp.float32)          # (Cout_p, Nb*HW)

    for s in range(Nb):
        out = instnorm_relu(h2[:, s * HW:(s + 1) * HW])[:Cout]
        if residual:                                          # forward's `if y:`
            out = out + x_ref[s, :Cout, :]
        o_ref[s] = out.astype(o_ref.dtype)


def double_conv(x, w1, b1, w2, b2, *, kernel_size=3, y=True):
    """Matches double_conv.forward(x, y) in eval mode.

    x: (N, in_ch, H, W); w1: (c1, in_ch, k, k); w2: (out_ch, c1, k, k).
    b1/b2 accepted for API parity but unused: bias before
    InstanceNorm2d(affine=False) cancels exactly.
    """
    del b1, b2
    N, Cin, H, W = x.shape
    C1, Cout = w1.shape[0], w2.shape[0]
    assert w1.shape[1] == Cin and w2.shape[1] == C1
    assert kernel_size in (1, 3), "module uses padding=1 for k!=1 ('same' only for k=3)"
    if y:
        assert Cin == Cout, "residual add requires in_ch == out_ch"
    HW = H * W
    KK = kernel_size * kernel_size

    # Pad channel dims to multiples of 8 (f32 sublane tile) so every scratch
    # write / matmul operand is tile-aligned.  Zero channels stay exactly zero
    # through conv -> InstanceNorm -> ReLU; outputs are emitted unpadded.
    Cin_p, C1_p, Cout_p = (_round_up(c, 8) for c in (Cin, C1, Cout))
    Cmax_p = max(Cin_p, C1_p)

    # Batch blocking: amortize per-grid-step overhead, but keep >=2 grid steps
    # when N >= 2 so v7x's two TensorCores each get work.  Cap Nb by a small
    # VMEM/vreg budget.
    per_sample_bytes = 4 * ((Cin_p + 2 * C1_p + Cout_p + KK * Cmax_p) * HW
                            + 2 * Cmax_p * (HW + 2 * (W + 1)))
    nb_cap = max(1, min(8, (4 * 2**20) // max(per_sample_bytes, 1)))
    Nb = max(1, min(-(-N // 2), nb_cap))
    G = -(-N // Nb)                                   # cdiv
    N_pad = G * Nb                                    # zero samples -> zero output

    xp = jnp.pad(x.astype(jnp.float32),
                 ((0, N_pad - N), (0, Cin_p - Cin), (0, 0), (0, 0))
                 ).reshape(N_pad, Cin_p, HW)
    w1p = jnp.pad(w1.astype(jnp.float32),
                  ((0, C1_p - C1), (0, Cin_p - Cin), (0, 0), (0, 0)))
    w2p = jnp.pad(w2.astype(jnp.float32),
                  ((0, Cout_p - Cout), (0, C1_p - C1), (0, 0), (0, 0)))
    # Fold taps into the contraction dim: (O, C, ky, kx) -> (O, (ky*k+kx)*C + c).
    w1f = jnp.transpose(w1p, (0, 2, 3, 1)).reshape(C1_p, KK * Cin_p)
    w2f = jnp.transpose(w2p, (0, 2, 3, 1)).reshape(Cout_p, KK * C1_p)

    kern = functools.partial(_double_conv_kernel, H=H, W=W, Nb=Nb, Cin_p=Cin_p,
                             C1_p=C1_p, Cout=Cout, k=kernel_size,
                             residual=bool(y))

    flops = 2 * N_pad * HW * KK * (Cin_p * C1_p + C1_p * Cout_p)
    bytes_accessed = 4 * (N_pad * (Cin_p + Cout) * HW
                          + G * KK * (Cin_p * C1_p + C1_p * Cout_p))
    block_bytes = Nb * per_sample_bytes + 4 * KK * (Cin_p * C1_p + C1_p * Cout_p)

    # Per-generation VMEM cap (v7x per-TC physical is 64 MiB; never ask for more).
    try:
        vmem_cap = int(pltpu.get_tpu_info().vmem_capacity_bytes)
    except Exception:
        vmem_cap = 64 * 2**20
    vmem_limit = int(min(3 * vmem_cap // 4, max(8 * 2**20, 8 * block_bytes)))
    assert 3 * block_bytes <= vmem_limit, (
        "image too large for the single-slab design; add HW tiling")

    out = pl.pallas_call(
        kern,
        out_shape=jax.ShapeDtypeStruct((N_pad, Cout, HW), jnp.float32),
        grid_spec=pltpu.PrefetchScalarGridSpec(
            num_scalar_prefetch=0,
            grid=(G,),
            in_specs=[
                pl.BlockSpec((Nb, Cin_p, HW), lambda g: (g, 0, 0)),
                pl.BlockSpec((C1_p, KK * Cin_p), lambda g: (0, 0)),
                pl.BlockSpec((Cout_p, KK * C1_p), lambda g: (0, 0)),
            ],
            out_specs=pl.BlockSpec((Nb, Cout, HW), lambda g: (g, 0, 0)),
            scratch_shapes=[pltpu.VMEM((KK * Cmax_p, Nb * HW), jnp.float32)],
        ),
        compiler_params=pltpu.CompilerParams(
            dimension_semantics=("parallel",),
            vmem_limit_bytes=vmem_limit),
        cost_estimate=pl.CostEstimate(
            flops=flops,
            transcendentals=N_pad * (C1_p + Cout_p),
            bytes_accessed=bytes_accessed),
    )(xp, w1f, w2f)

    if N_pad != N:
        out = out[:N]
    return out.reshape(N, Cout, H, W)


def _reference(x, w1, b1, w2, b2, y):
    """Pure-JAX reference of the PyTorch forward (eval mode, biases included)."""
    def conv(h, w, b):
        return jax.lax.conv_general_dilated(
            h, w, (1, 1), "SAME",
            dimension_numbers=("NCHW", "OIHW", "NCHW")) + b.reshape(1, -1, 1, 1)

    def inr(h):
        m = h.mean(axis=(2, 3), keepdims=True)
        v = ((h - m) ** 2).mean(axis=(2, 3), keepdims=True)
        return jnp.maximum((h - m) * jax.lax.rsqrt(v + 1e-5), 0.0)

    out = inr(conv(x, w1, b1))
    out = inr(conv(out, w2, b2))
    return x + out if y else out


if __name__ == "__main__":
    # Small shapes consistent with the module: in_ch = out_ch = 4, 3x3 conv.
    N, Cin, Cout, H, W, K = 2, 4, 4, 16, 16, 3

    key = jax.random.PRNGKey(0)
    k1, k2, k3, k4, k5 = jax.random.split(key, 5)
    bound = 1.0 / np.sqrt(Cin * K * K)
    x = jax.random.normal(k1, (N, Cin, H, W), jnp.float32)
    w1 = jax.random.uniform(k2, (Cin, Cin, K, K), jnp.float32, -bound, bound)
    b1 = jax.random.uniform(k3, (Cin,), jnp.float32, -bound, bound)
    w2 = jax.random.uniform(k4, (Cout, Cin, K, K), jnp.float32, -bound, bound)
    b2 = jax.random.uniform(k5, (Cout,), jnp.float32, -bound, bound)

    out = jax.block_until_ready(double_conv(x, w1, b1, w2, b2, kernel_size=K, y=True))
    ref = jax.block_until_ready(_reference(x, w1, b1, w2, b2, True))
    np.testing.assert_allclose(np.asarray(out), np.asarray(ref), rtol=1e-3, atol=1e-3)

    out2 = jax.block_until_ready(double_conv(x, w1, b1, w2, b2, kernel_size=K, y=False))
    ref2 = jax.block_until_ready(_reference(x, w1, b1, w2, b2, False))
    np.testing.assert_allclose(np.asarray(out2), np.asarray(ref2), rtol=1e-3, atol=1e-3)

    # Exercise the batch-folded path (Nb=2, padded last block) with odd N.
    x3 = jax.random.normal(k1, (3, Cin, H, W), jnp.float32)
    out3 = jax.block_until_ready(double_conv(x3, w1, b1, w2, b2, kernel_size=K, y=True))
    ref3 = jax.block_until_ready(_reference(x3, w1, b1, w2, b2, True))
    np.testing.assert_allclose(np.asarray(out3), np.asarray(ref3), rtol=1e-3, atol=1e-3)

    print("KERNEL_OK")
</pallas_src>

<mosaic_0001>
module attributes {stable_mosaic.version = 11 : i64} {
  func.func @_double_conv_kernel(%arg0: i32, %arg1: memref<1x8x256xf32, #tpu.memory_space<vmem>>, %arg2: memref<8x72xf32, #tpu.memory_space<vmem>>, %arg3: memref<8x72xf32, #tpu.memory_space<vmem>>, %arg4: memref<1x4x256xf32, #tpu.memory_space<vmem>>, %arg5: memref<72x256xf32, #tpu.memory_space<vmem>>) attributes {dimension_semantics = [#tpu.dimension_semantics<parallel>], iteration_bounds = array<i64: 2>, scalar_prefetch = 0 : i64, scratch_operands = 1 : i64, tpu.core_type = #tpu.core_type<tc>, window_params = [{transform_indices = @transform_0, window_bounds = array<i64: 1, 8, 256>}, {pipeline_mode = #tpu.pipeline_mode<synchronous>, transform_indices = @transform_1, window_bounds = array<i64: 8, 72>}, {pipeline_mode = #tpu.pipeline_mode<synchronous>, transform_indices = @transform_2, window_bounds = array<i64: 8, 72>}, {transform_indices = @transform_3, window_bounds = array<i64: 1, 4, 256>}]} {
    %0 = tpu.iota {dimensions = array<i32: 1>} : vector<1x256xi32>
    %c16_i32 = arith.constant 16 : i32
    %c0_i32 = arith.constant 0 : i32
    %1 = arith.cmpi eq, %c16_i32, %c0_i32 : i32
    %c1_i32 = arith.constant 1 : i32
    %2 = arith.select %1, %c1_i32, %c16_i32 : i32
    %3 = vector.broadcast %2 : i32 to vector<1x256xi32>
    %4 = arith.remsi %0, %3 : vector<1x256xi32>
    %c0_i32_0 = arith.constant 0 : i32
    %5 = vector.broadcast %c0_i32_0 : i32 to vector<1x256xi32>
    %6 = arith.cmpi ne, %4, %5 : vector<1x256xi32>
    %c0_i32_1 = arith.constant 0 : i32
    %7 = vector.broadcast %c0_i32_1 : i32 to vector<1x256xi32>
    %8 = arith.cmpi slt, %4, %7 : vector<1x256xi32>
    %c0_i32_2 = arith.constant 0 : i32
    %9 = arith.cmpi slt, %2, %c0_i32_2 : i32
    %10 = vector.broadcast %9 : i1 to vector<1x256xi1>
    %11 = vector.broadcast %10 : vector<1x256xi1> to vector<1x256xi1>
    %12 = arith.xori %8, %11 : vector<1x256xi1>
    %13 = arith.andi %12, %6 : vector<1x256xi1>
    %14 = vector.broadcast %2 : i32 to vector<1x256xi32>
    %15 = arith.addi %4, %14 : vector<1x256xi32>
    %16 = arith.select %13, %15, %4 : vector<1x256xi1>, vector<1x256xi32>
    %c1_i32_3 = arith.constant 1 : i32
    %17 = vector.broadcast %c1_i32_3 : i32 to vector<1x256xi32>
    %18 = arith.cmpi sge, %16, %17 : vector<1x256xi32>
    %c14_i32 = arith.constant 14 : i32
    %19 = vector.broadcast %c14_i32 : i32 to vector<1x256xi32>
    %20 = arith.cmpi sle, %16, %19 : vector<1x256xi32>
    %c0 = arith.constant 0 : index
    %c0_4 = arith.constant 0 : index
    %c0_5 = arith.constant 0 : index
    %21 = vector.load %arg1[%c0, %c0_4, %c0_5] : memref<1x8x256xf32, #tpu.memory_space<vmem>>, vector<1x8x256xf32>
    %22 = vector.shape_cast %21 : vector<1x8x256xf32> to vector<8x256xf32>
    %cst = arith.constant 0.000000e+00 : f32
    %23 = vector.broadcast %cst : f32 to vector<8x17xf32>
    %24 = tpu.concatenate %23, %22, %23 in 1 : vector<8x17xf32>, vector<8x256xf32>, vector<8x17xf32> -> vector<8x290xf32>
    %25 = vector.extract_strided_slice %24 {offsets = [0, 0], sizes = [8, 256], strides = [1, 1]} : vector<8x290xf32> to vector<8x256xf32>
    %cst_6 = arith.constant 0.000000e+00 : f32
    %26 = vector.shape_cast %18 : vector<1x256xi1> to vector<1x256xi1>
    %27 = vector.broadcast %26 : vector<1x256xi1> to vector<8x256xi1>
    %28 = vector.broadcast %cst_6 : f32 to vector<8x256xf32>
    %29 = arith.select %27, %25, %28 : vector<8x256xi1>, vector<8x256xf32>
    %c0_7 = arith.constant 0 : index
    %c0_8 = arith.constant 0 : index
    %30 = vector.load %arg5[%c0_7, %c0_8] : memref<72x256xf32, #tpu.memory_space<vmem>>, vector<8x256xf32>
    tpu.vector_store %arg5[%c0_7, %c0_8], %29 {strides = array<i32>} : memref<72x256xf32, #tpu.memory_space<vmem>>, vector<8x256xf32>,
    %31 = vector.extract_strided_slice %24 {offsets = [0, 1], sizes = [8, 256], strides = [1, 1]} : vector<8x290xf32> to vector<8x256xf32>
    %c8 = arith.constant 8 : index
    %c0_9 = arith.constant 0 : index
    %32 = vector.load %arg5[%c8, %c0_9] : memref<72x256xf32, #tpu.memory_space<vmem>>, vector<8x256xf32>
    tpu.vector_store %arg5[%c8, %c0_9], %31 {strides = array<i32>} : memref<72x256xf32, #tpu.memory_space<vmem>>, vector<8x256xf32>,
    %33 = vector.extract_strided_slice %24 {offsets = [0, 2], sizes = [8, 256], strides = [1, 1]} : vector<8x290xf32> to vector<8x256xf32>
    %cst_10 = arith.constant 0.000000e+00 : f32
    %34 = vector.shape_cast %20 : vector<1x256xi1> to vector<1x256xi1>
    %35 = vector.broadcast %34 : vector<1x256xi1> to vector<8x256xi1>
    %36 = vector.broadcast %cst_10 : f32 to vector<8x256xf32>
    %37 = arith.select %35, %33, %36 : vector<8x256xi1>, vector<8x256xf32>
    %c16 = arith.constant 16 : index
    %c0_11 = arith.constant 0 : index
    %38 = vector.load %arg5[%c16, %c0_11] : memref<72x256xf32, #tpu.memory_space<vmem>>, vector<8x256xf32>
    tpu.vector_store %arg5[%c16, %c0_11], %37 {strides = array<i32>} : memref<72x256xf32, #tpu.memory_space<vmem>>, vector<8x256xf32>,
    %39 = vector.extract_strided_slice %24 {offsets = [0, 16], sizes = [8, 256], strides = [1, 1]} : vector<8x290xf32> to vector<8x256xf32>
    %cst_12 = arith.constant 0.000000e+00 : f32
    %40 = vector.shape_cast %18 : vector<1x256xi1> to vector<1x256xi1>
    %41 = vector.broadcast %40 : vector<1x256xi1> to vector<8x256xi1>
    %42 = vector.broadcast %cst_12 : f32 to vector<8x256xf32>
    %43 = arith.select %41, %39, %42 : vector<8x256xi1>, vector<8x256xf32>
    %c24 = arith.constant 24 : index
    %c0_13 = arith.constant 0 : index
    %44 = vector.load %arg5[%c24, %c0_13] : memref<72x256xf32, #tpu.memory_space<vmem>>, vector<8x256xf32>
    tpu.vector_store %arg5[%c24, %c0_13], %43 {strides = array<i32>} : memref<72x256xf32, #tpu.memory_space<vmem>>, vector<8x256xf32>,
    %45 = vector.extract_strided_slice %24 {offsets = [0, 17], sizes = [8, 256], strides = [1, 1]} : vector<8x290xf32> to vector<8x256xf32>
    %c32 = arith.constant 32 : index
    %c0_14 = arith.constant 0 : index
    %46 = vector.load %arg5[%c32, %c0_14] : memref<72x256xf32, #tpu.memory_space<vmem>>, vector<8x256xf32>
    tpu.vector_store %arg5[%c32, %c0_14], %45 {strides = array<i32>} : memref<72x256xf32, #tpu.memory_space<vmem>>, vector<8x256xf32>,
    %47 = vector.extract_strided_slice %24 {offsets = [0, 18], sizes = [8, 256], strides = [1, 1]} : vector<8x290xf32> to vector<8x256xf32>
    %cst_15 = arith.constant 0.000000e+00 : f32
    %48 = vector.shape_cast %20 : vector<1x256xi1> to vector<1x256xi1>
    %49 = vector.broadcast %48 : vector<1x256xi1> to vector<8x256xi1>
    %50 = vector.broadcast %cst_15 : f32 to vector<8x256xf32>
    %51 = arith.select %49, %47, %50 : vector<8x256xi1>, vector<8x256xf32>
    %c40 = arith.constant 40 : index
    %c0_16 = arith.constant 0 : index
    %52 = vector.load %arg5[%c40, %c0_16] : memref<72x256xf32, #tpu.memory_space<vmem>>, vector<8x256xf32>
    tpu.vector_store %arg5[%c40, %c0_16], %51 {strides = array<i32>} : memref<72x256xf32, #tpu.memory_space<vmem>>, vector<8x256xf32>,
    %53 = vector.extract_strided_slice %24 {offsets = [0, 32], sizes = [8, 256], strides = [1, 1]} : vector<8x290xf32> to vector<8x256xf32>
    %cst_17 = arith.constant 0.000000e+00 : f32
    %54 = vector.shape_cast %18 : vector<1x256xi1> to vector<1x256xi1>
    %55 = vector.broadcast %54 : vector<1x256xi1> to vector<8x256xi1>
    %56 = vector.broadcast %cst_17 : f32 to vector<8x256xf32>
    %57 = arith.select %55, %53, %56 : vector<8x256xi1>, vector<8x256xf32>
    %c48 = arith.constant 48 : index
    %c0_18 = arith.constant 0 : index
    %58 = vector.load %arg5[%c48, %c0_18] : memref<72x256xf32, #tpu.memory_space<vmem>>, vector<8x256xf32>
    tpu.vector_store %arg5[%c48, %c0_18], %57 {strides = array<i32>} : memref<72x256xf32, #tpu.memory_space<vmem>>, vector<8x256xf32>,
    %59 = vector.extract_strided_slice %24 {offsets = [0, 33], sizes = [8, 256], strides = [1, 1]} : vector<8x290xf32> to vector<8x256xf32>
    %c56 = arith.constant 56 : index
    %c0_19 = arith.constant 0 : index
    %60 = vector.load %arg5[%c56, %c0_19] : memref<72x256xf32, #tpu.memory_space<vmem>>, vector<8x256xf32>
    tpu.vector_store %arg5[%c56, %c0_19], %59 {strides = array<i32>} : memref<72x256xf32, #tpu.memory_space<vmem>>, vector<8x256xf32>,
    %61 = vector.extract_strided_slice %24 {offsets = [0, 34], sizes = [8, 256], strides = [1, 1]} : vector<8x290xf32> to vector<8x256xf32>
    %cst_20 = arith.constant 0.000000e+00 : f32
    %62 = vector.shape_cast %20 : vector<1x256xi1> to vector<1x256xi1>
    %63 = vector.broadcast %62 : vector<1x256xi1> to vector<8x256xi1>
    %64 = vector.broadcast %cst_20 : f32 to vector<8x256xf32>
    %65 = arith.select %63, %61, %64 : vector<8x256xi1>, vector<8x256xf32>
    %c64 = arith.constant 64 : index
    %c0_21 = arith.constant 0 : index
    %66 = vector.load %arg5[%c64, %c0_21] : memref<72x256xf32, #tpu.memory_space<vmem>>, vector<8x256xf32>
    tpu.vector_store %arg5[%c64, %c0_21], %65 {strides = array<i32>} : memref<72x256xf32, #tpu.memory_space<vmem>>, vector<8x256xf32>,
    %c0_22 = arith.constant 0 : index
    %c0_23 = arith.constant 0 : index
    %67 = vector.load %arg2[%c0_22, %c0_23] : memref<8x72xf32, #tpu.memory_space<vmem>>, vector<8x72xf32>
    %c0_24 = arith.constant 0 : index
    %c0_25 = arith.constant 0 : index
    %68 = vector.load %arg5[%c0_24, %c0_25] : memref<72x256xf32, #tpu.memory_space<vmem>>, vector<72x256xf32>
    %cst_26 = arith.constant dense<0.000000e+00> : vector<8x256xf32>
    %69 = tpu.matmul %67, %68, %cst_26 {dimension_numbers = #tpu.dot_dimension_numbers<[1], [0], [0], [1], [0, 0, 1, 1], [], []>} : vector<8x72xf32>, vector<72x256xf32>, vector<8x256xf32> -> vector<8x256xf32>
    %cst_27 = arith.constant dense<0.000000e+00> : vector<8xf32>
    %70 = vector.multi_reduction <add>, %69, %cst_27 [1] : vector<8x256xf32> to vector<8xf32>
    %71 = vector.shape_cast %70 : vector<8xf32> to vector<8x1xf32>
    %cst_28 = arith.constant 2.560000e+02 : f32
    %72 = vector.broadcast %cst_28 : f32 to vector<8x1xf32>
    %73 = arith.divf %71, %72 : vector<8x1xf32>
    %74 = vector.broadcast %73 : vector<8x1xf32> to vector<8x256xf32>
    %75 = arith.subf %69, %74 : vector<8x256xf32>
    %76 = arith.mulf %75, %75 : vector<8x256xf32>
    %cst_29 = arith.constant dense<0.000000e+00> : vector<8xf32>
    %77 = vector.multi_reduction <add>, %76, %cst_29 [1] : vector<8x256xf32> to vector<8xf32>
    %78 = vector.shape_cast %77 : vector<8xf32> to vector<8x1xf32>
    %cst_30 = arith.constant 2.560000e+02 : f32
    %79 = vector.broadcast %cst_30 : f32 to vector<8x1xf32>
    %80 = arith.divf %78, %79 : vector<8x1xf32>
    %cst_31 = arith.constant 9.99999974E-6 : f32
    %81 = vector.broadcast %cst_31 : f32 to vector<8x1xf32>
    %82 = arith.addf %80, %81 : vector<8x1xf32>
    %83 = math.rsqrt %82 : vector<8x1xf32>
    %84 = vector.broadcast %83 : vector<8x1xf32> to vector<8x256xf32>
    %85 = arith.mulf %75, %84 : vector<8x256xf32>
    %cst_32 = arith.constant 0.000000e+00 : f32
    %86 = vector.broadcast %cst_32 : f32 to vector<8x256xf32>
    %87 = arith.maximumf %85, %86 : vector<8x256xf32>
    %cst_33 = arith.constant 0.000000e+00 : f32
    %88 = vector.broadcast %cst_33 : f32 to vector<8x17xf32>
    %89 = tpu.concatenate %88, %87, %88 in 1 : vector<8x17xf32>, vector<8x256xf32>, vector<8x17xf32> -> vector<8x290xf32>
    %90 = vector.extract_strided_slice %89 {offsets = [0, 0], sizes = [8, 256], strides = [1, 1]} : vector<8x290xf32> to vector<8x256xf32>
    %cst_34 = arith.constant 0.000000e+00 : f32
    %91 = vector.shape_cast %18 : vector<1x256xi1> to vector<1x256xi1>
    %92 = vector.broadcast %91 : vector<1x256xi1> to vector<8x256xi1>
    %93 = vector.broadcast %cst_34 : f32 to vector<8x256xf32>
    %94 = arith.select %92, %90, %93 : vector<8x256xi1>, vector<8x256xf32>
    %c0_35 = arith.constant 0 : index
    %c0_36 = arith.constant 0 : index
    %95 = vector.load %arg5[%c0_35, %c0_36] : memref<72x256xf32, #tpu.memory_space<vmem>>, vector<8x256xf32>
    tpu.vector_store %arg5[%c0_35, %c0_36], %94 {strides = array<i32>} : memref<72x256xf32, #tpu.memory_space<vmem>>, vector<8x256xf32>,
    %96 = vector.extract_strided_slice %89 {offsets = [0, 1], sizes = [8, 256], strides = [1, 1]} : vector<8x290xf32> to vector<8x256xf32>
    %c8_37 = arith.constant 8 : index
    %c0_38 = arith.constant 0 : index
    %97 = vector.load %arg5[%c8_37, %c0_38] : memref<72x256xf32, #tpu.memory_space<vmem>>, vector<8x256xf32>
    tpu.vector_store %arg5[%c8_37, %c0_38], %96 {strides = array<i32>} : memref<72x256xf32, #tpu.memory_space<vmem>>, vector<8x256xf32>,
    %98 = vector.extract_strided_slice %89 {offsets = [0, 2], sizes = [8, 256], strides = [1, 1]} : vector<8x290xf32> to vector<8x256xf32>
    %cst_39 = arith.constant 0.000000e+00 : f32
    %99 = vector.shape_cast %20 : vector<1x256xi1> to vector<1x256xi1>
    %100 = vector.broadcast %99 : vector<1x256xi1> to vector<8x256xi1>
    %101 = vector.broadcast %cst_39 : f32 to vector<8x256xf32>
    %102 = arith.select %100, %98, %101 : vector<8x256xi1>, vector<8x256xf32>
    %c16_40 = arith.constant 16 : index
    %c0_41 = arith.constant 0 : index
    %103 = vector.load %arg5[%c16_40, %c0_41] : memref<72x256xf32, #tpu.memory_space<vmem>>, vector<8x256xf32>
    tpu.vector_store %arg5[%c16_40, %c0_41], %102 {strides = array<i32>} : memref<72x256xf32, #tpu.memory_space<vmem>>, vector<8x256xf32>,
    %104 = vector.extract_strided_slice %89 {offsets = [0, 16], sizes = [8, 256], strides = [1, 1]} : vector<8x290xf32> to vector<8x256xf32>
    %cst_42 = arith.constant 0.000000e+00 : f32
    %105 = vector.shape_cast %18 : vector<1x256xi1> to vector<1x256xi1>
    %106 = vector.broadcast %105 : vector<1x256xi1> to vector<8x256xi1>
    %107 = vector.broadcast %cst_42 : f32 to vector<8x256xf32>
    %108 = arith.select %106, %104, %107 : vector<8x256xi1>, vector<8x256xf32>
    %c24_43 = arith.constant 24 : index
    %c0_44 = arith.constant 0 : index
    %109 = vector.load %arg5[%c24_43, %c0_44] : memref<72x256xf32, #tpu.memory_space<vmem>>, vector<8x256xf32>
    tpu.vector_store %arg5[%c24_43, %c0_44], %108 {strides = array<i32>} : memref<72x256xf32, #tpu.memory_space<vmem>>, vector<8x256xf32>,
    %110 = vector.extract_strided_slice %89 {offsets = [0, 17], sizes = [8, 256], strides = [1, 1]} : vector<8x290xf32> to vector<8x256xf32>
    %c32_45 = arith.constant 32 : index
    %c0_46 = arith.constant 0 : index
    %111 = vector.load %arg5[%c32_45, %c0_46] : memref<72x256xf32, #tpu.memory_space<vmem>>, vector<8x256xf32>
    tpu.vector_store %arg5[%c32_45, %c0_46], %110 {strides = array<i32>} : memref<72x256xf32, #tpu.memory_space<vmem>>, vector<8x256xf32>,
    %112 = vector.extract_strided_slice %89 {offsets = [0, 18], sizes = [8, 256], strides = [1, 1]} : vector<8x290xf32> to vector<8x256xf32>
    %cst_47 = arith.constant 0.000000e+00 : f32
    %113 = vector.shape_cast %20 : vector<1x256xi1> to vector<1x256xi1>
    %114 = vector.broadcast %113 : vector<1x256xi1> to vector<8x256xi1>
    %115 = vector.broadcast %cst_47 : f32 to vector<8x256xf32>
    %116 = arith.select %114, %112, %115 : vector<8x256xi1>, vector<8x256xf32>
    %c40_48 = arith.constant 40 : index
    %c0_49 = arith.constant 0 : index
    %117 = vector.load %arg5[%c40_48, %c0_49] : memref<72x256xf32, #tpu.memory_space<vmem>>, vector<8x256xf32>
    tpu.vector_store %arg5[%c40_48, %c0_49], %116 {strides = array<i32>} : memref<72x256xf32, #tpu.memory_space<vmem>>, vector<8x256xf32>,
    %118 = vector.extract_strided_slice %89 {offsets = [0, 32], sizes = [8, 256], strides = [1, 1]} : vector<8x290xf32> to vector<8x256xf32>
    %cst_50 = arith.constant 0.000000e+00 : f32
    %119 = vector.shape_cast %18 : vector<1x256xi1> to vector<1x256xi1>
    %120 = vector.broadcast %119 : vector<1x256xi1> to vector<8x256xi1>
    %121 = vector.broadcast %cst_50 : f32 to vector<8x256xf32>
    %122 = arith.select %120, %118, %121 : vector<8x256xi1>, vector<8x256xf32>
    %c48_51 = arith.constant 48 : index
    %c0_52 = arith.constant 0 : index
    %123 = vector.load %arg5[%c48_51, %c0_52] : memref<72x256xf32, #tpu.memory_space<vmem>>, vector<8x256xf32>
    tpu.vector_store %arg5[%c48_51, %c0_52], %122 {strides = array<i32>} : memref<72x256xf32, #tpu.memory_space<vmem>>, vector<8x256xf32>,
    %124 = vector.extract_strided_slice %89 {offsets = [0, 33], sizes = [8, 256], strides = [1, 1]} : vector<8x290xf32> to vector<8x256xf32>
    %c56_53 = arith.constant 56 : index
    %c0_54 = arith.constant 0 : index
    %125 = vector.load %arg5[%c56_53, %c0_54] : memref<72x256xf32, #tpu.memory_space<vmem>>, vector<8x256xf32>
    tpu.vector_store %arg5[%c56_53, %c0_54], %124 {strides = array<i32>} : memref<72x256xf32, #tpu.memory_space<vmem>>, vector<8x256xf32>,
    %126 = vector.extract_strided_slice %89 {offsets = [0, 34], sizes = [8, 256], strides = [1, 1]} : vector<8x290xf32> to vector<8x256xf32>
    %cst_55 = arith.constant 0.000000e+00 : f32
    %127 = vector.shape_cast %20 : vector<1x256xi1> to vector<1x256xi1>
    %128 = vector.broadcast %127 : vector<1x256xi1> to vector<8x256xi1>
    %129 = vector.broadcast %cst_55 : f32 to vector<8x256xf32>
    %130 = arith.select %128, %126, %129 : vector<8x256xi1>, vector<8x256xf32>
    %c64_56 = arith.constant 64 : index
    %c0_57 = arith.constant 0 : index
    %131 = vector.load %arg5[%c64_56, %c0_57] : memref<72x256xf32, #tpu.memory_space<vmem>>, vector<8x256xf32>
    tpu.vector_store %arg5[%c64_56, %c0_57], %130 {strides = array<i32>} : memref<72x256xf32, #tpu.memory_space<vmem>>, vector<8x256xf32>,
    %c0_58 = arith.constant 0 : index
    %c0_59 = arith.constant 0 : index
    %132 = vector.load %arg3[%c0_58, %c0_59] : memref<8x72xf32, #tpu.memory_space<vmem>>, vector<8x72xf32>
    %c0_60 = arith.constant 0 : index
    %c0_61 = arith.constant 0 : index
    %133 = vector.load %arg5[%c0_60, %c0_61] : memref<72x256xf32, #tpu.memory_space<vmem>>, vector<72x256xf32>
    %cst_62 = arith.constant dense<0.000000e+00> : vector<8x256xf32>
    %134 = tpu.matmul %132, %133, %cst_62 {dimension_numbers = #tpu.dot_dimension_numbers<[1], [0], [0], [1], [0, 0, 1, 1], [], []>} : vector<8x72xf32>, vector<72x256xf32>, vector<8x256xf32> -> vector<8x256xf32>
    %cst_63 = arith.constant dense<0.000000e+00> : vector<8xf32>
    %135 = vector.multi_reduction <add>, %134, %cst_63 [1] : vector<8x256xf32> to vector<8xf32>
    %136 = vector.shape_cast %135 : vector<8xf32> to vector<8x1xf32>
    %cst_64 = arith.constant 2.560000e+02 : f32
    %137 = vector.broadcast %cst_64 : f32 to vector<8x1xf32>
    %138 = arith.divf %136, %137 : vector<8x1xf32>
    %139 = vector.broadcast %138 : vector<8x1xf32> to vector<8x256xf32>
    %140 = arith.subf %134, %139 : vector<8x256xf32>
    %141 = arith.mulf %140, %140 : vector<8x256xf32>
    %cst_65 = arith.constant dense<0.000000e+00> : vector<8xf32>
    %142 = vector.multi_reduction <add>, %141, %cst_65 [1] : vector<8x256xf32> to vector<8xf32>
    %143 = vector.shape_cast %142 : vector<8xf32> to vector<8x1xf32>
    %cst_66 = arith.constant 2.560000e+02 : f32
    %144 = vector.broadcast %cst_66 : f32 to vector<8x1xf32>
    %145 = arith.divf %143, %144 : vector<8x1xf32>
    %cst_67 = arith.constant 9.99999974E-6 : f32
    %146 = vector.broadcast %cst_67 : f32 to vector<8x1xf32>
    %147 = arith.addf %145, %146 : vector<8x1xf32>
    %148 = math.rsqrt %147 : vector<8x1xf32>
    %149 = vector.broadcast %148 : vector<8x1xf32> to vector<8x256xf32>
    %150 = arith.mulf %140, %149 : vector<8x256xf32>
    %cst_68 = arith.constant 0.000000e+00 : f32
    %151 = vector.broadcast %cst_68 : f32 to vector<8x256xf32>
    %152 = arith.maximumf %150, %151 : vector<8x256xf32>
    %153 = vector.extract_strided_slice %152 {offsets = [0, 0], sizes = [4, 256], strides = [1, 1]} : vector<8x256xf32> to vector<4x256xf32>
    %c0_69 = arith.constant 0 : index
    %c0_70 = arith.constant 0 : index
    %c0_71 = arith.constant 0 : index
    %154 = vector.load %arg1[%c0_69, %c0_70, %c0_71] : memref<1x8x256xf32, #tpu.memory_space<vmem>>, vector<1x4x256xf32>
    %155 = vector.shape_cast %154 : vector<1x4x256xf32> to vector<4x256xf32>
    %156 = arith.addf %153, %155 : vector<4x256xf32>
    %c0_72 = arith.constant 0 : index
    %c0_73 = arith.constant 0 : index
    %c0_74 = arith.constant 0 : index
    %157 = vector.load %arg4[%c0_72, %c0_73, %c0_74] : memref<1x4x256xf32, #tpu.memory_space<vmem>>, vector<1x4x256xf32>
    %158 = vector.shape_cast %157 : vector<1x4x256xf32> to vector<4x256xf32>
    %159 = vector.shape_cast %156 : vector<4x256xf32> to vector<1x4x256xf32>
    tpu.vector_store %arg4[%c0_72, %c0_73, %c0_74], %159 {strides = array<i32>} : memref<1x4x256xf32, #tpu.memory_space<vmem>>, vector<1x4x256xf32>,
    return
  }
  func.func @transform_0(%arg0: i32) -> (i32, i32, i32) {
    %c0_i32 = arith.constant 0 : i32
    %c0_i32_0 = arith.constant 0 : i32
    %c0_i32_1 = arith.constant 0 : i32
    return %arg0, %c0_i32, %c0_i32_0 : i32, i32, i32
  }
  func.func @transform_1(%arg0: i32) -> (i32, i32) {
    %c0_i32 = arith.constant 0 : i32
    %c0_i32_0 = arith.constant 0 : i32
    %c0_i32_1 = arith.constant 0 : i32
    return %c0_i32, %c0_i32_0 : i32, i32
  }
  func.func @transform_2(%arg0: i32) -> (i32, i32) {
    %c0_i32 = arith.constant 0 : i32
    %c0_i32_0 = arith.constant 0 : i32
    %c0_i32_1 = arith.constant 0 : i32
    return %c0_i32, %c0_i32_0 : i32, i32
  }
  func.func @transform_3(%arg0: i32) -> (i32, i32, i32) {
    %c0_i32 = arith.constant 0 : i32
    %c0_i32_0 = arith.constant 0 : i32
    %c0_i32_1 = arith.constant 0 : i32
    return %arg0, %c0_i32, %c0_i32_0 : i32, i32, i32
  }
}

</mosaic_0001>

<llo_original>
// kernel: tpu_custom_call.1
$region0: #{tpu_custom_call.1}
  #allocation0 [shape = 'u32[]', space=smem, size = 0x4, offset = 0x4, fixed_abs, tag = 'smem constant byte address 0x4 - core index']
  #allocation1 [shape = 'u32[144,128]{1,0:T(1,128)}', space=vmem, size = 0x12000, scoped, tag = 'internal scratch']
  #allocation2 [shape = 'f32[72,256]{1,0:T(8,128)}', space=vmem, size = 0x12000, scoped, tag = 'scratch operand']
  %s0 = inlined_call_operand.hbm [shape: f32[2,8,256], index: 0, kind: input, shape index: {}]
  %s1 = inlined_call_operand.hbm [shape: f32[8,72], index: 1, kind: input, shape index: {}]
  %s2 = inlined_call_operand.hbm [shape: f32[8,72], index: 2, kind: input, shape index: {}]
  %s3 = inlined_call_operand.hbm [shape: f32[2,4,256], index: 3, kind: output, shape index: {}]
  %s4 = sld [smem:[#allocation0]]
  $region57: #{tpu_custom_call.1} parent=0
    _
  %s6 = ssub.s32 1, %s4
  %s7 = scalar_select 0, %s6, %s4
  $region1: #{tpu_custom_call.1} parent=0
    #allocation3 [shape = 'u8[16384]{0}', space=vmem, size = 0x4000, scoped, tag = 'input window, operand 0']
    #allocation4 [shape = 's32[2]{0}', space=sflag, size = 0x8, scoped, tag = 'scoped memory for tpu_custom_call.1']
    #allocation5 [shape = 's32[2]{0}', space=sflag, size = 0x8, scoped, tag = 'scoped memory for tpu_custom_call.1']
    #allocation6 [shape = 'u8[4096]{0}', space=vmem, size = 0x1000, scoped, tag = 'input window, operand 1, single buffered']
    #allocation7 [shape = 's32[1]{0}', space=sflag, size = 0x4, scoped, tag = 'scoped memory for tpu_custom_call.1']
    #allocation8 [shape = 'u8[4096]{0}', space=vmem, size = 0x1000, scoped, tag = 'input window, operand 2, single buffered']
    #allocation9 [shape = 'u8[8192]{0}', space=vmem, size = 0x2000, scoped, tag = 'output window, operand 0']
    %8 = vsyncpa [#allocation4], 0
    %s9 = scalar_lea.sflag [#allocation4], 1
    %10 = vsyncpa %s9, 0
    %11 = vsyncpa [#allocation7], 0
    %12 = vsyncpa [#allocation5], 0
    %s13 = scalar_lea.sflag [#allocation5], 1
    %14 = vsyncpa %s13, 0
    loop: start=0, step=1, limit=4
    $region2: #{tpu_custom_call.1} parent=1 // loop_pre_header
      _
    $region3: #{tpu_custom_call.1} parent=1 // loop_header
      %s16 = sphi 0, %s20
      %p17 = scmp.ge.s32.totalorder %s16, 4
      %s26 = sphi 0, %s28
      %s29 = sphi 0, %s26
      %s30 = sphi 0, %s29
      %s46 = sphi 0, %s30
      %s50 = sphi 0, %s50
      %s52 = sphi 0, %s50
      %s53 = sphi 0, %s52
      %s67 = sphi 0, %s53
      %s71 = sphi 0, %s71
      %s73 = sphi 0, %s71
      %s74 = sphi 0, %s73
      %s88 = sphi 0, %s74
      %s94 = sphi 0, %s96
      %s97 = sphi 0, %s94
      %s98 = sphi 0, %s97
      %s114 = sphi 0, %s98
    $region4: #{tpu_custom_call.1} parent=1 // loop_header_branch
      %19 = sbr.rel (%p17) target = $region8
    $region5: #{tpu_custom_call.1} parent=1 // loop_body
      %s21 = ssub.s32 %s16, 1
      %s22 = ssub.s32 %s16, 2
      %s23 = sadd.s32 %s16, 1
      %s24 = ssub.s32 %s16, %s23
      %p25 = scmp.eq.s32.totalorder %s24, 0
      %s27 = sadd.s32 %s26, 1
      %s28 = scalar_select %p25, %s26, %s27
      %p31 = pneg %p25
      %p32 = scmp.eq.s32.totalorder %s16, 1
      %p33 = por %p31, %p32
      %p34 = scmp.ne.s32.totalorder %s26, %s29
      %p35 = scmp.eq.s32.totalorder %s16, 0
      %p36 = por %p34, %p35
      %p37 = scmp.ne.s32.totalorder %s26, %s29
      %p38 = scmp.eq.s32.totalorder %s21, 1
      %p39 = por %p37, %p38
      %p40 = scmp.ne.s32.totalorder %s29, %s30
      %p41 = scmp.eq.s32.totalorder %s21, 0
      %p42 = por %p40, %p41
      %p43 = scmp.ne.s32.totalorder %s29, %s30
      %p44 = scmp.eq.s32.totalorder %s22, 1
      %p45 = por %p43, %p44
      %p47 = scmp.ne.s32.totalorder %s30, %s46
      %p48 = scmp.eq.s32.totalorder %s22, 0
      %p49 = por %p47, %p48
      %s51 = sadd.s32 %s50, 1
      %p54 = scmp.eq.s32.totalorder %s16, 1
      %p55 = scmp.ne.s32.totalorder %s50, %s52
      %p56 = scmp.eq.s32.totalorder %s16, 0
      %p57 = por %p55, %p56
      %p58 = scmp.ne.s32.totalorder %s50, %s52
      %p59 = scmp.eq.s32.totalorder %s21, 1
      %p60 = por %p58, %p59
      %p61 = scmp.ne.s32.totalorder %s52, %s53
      %p62 = scmp.eq.s32.totalorder %s21, 0
      %p63 = por %p61, %p62
      %p64 = scmp.ne.s32.totalorder %s52, %s53
      %p65 = scmp.eq.s32.totalorder %s22, 1
      %p66 = por %p64, %p65
      %p68 = scmp.ne.s32.totalorder %s53, %s67
      %p69 = scmp.eq.s32.totalorder %s22, 0
      %p70 = por %p68, %p69
      %s72 = sadd.s32 %s71, 1
      %p75 = scmp.eq.s32.totalorder %s16, 1
      %p76 = scmp.ne.s32.totalorder %s71, %s73
      %p77 = scmp.eq.s32.totalorder %s16, 0
      %p78 = por %p76, %p77
      %p79 = scmp.ne.s32.totalorder %s71, %s73
      %p80 = scmp.eq.s32.totalorder %s21, 1
      %p81 = por %p79, %p80
      %p82 = scmp.ne.s32.totalorder %s73, %s74
      %p83 = scmp.eq.s32.totalorder %s21, 0
      %p84 = por %p82, %p83
      %p85 = scmp.ne.s32.totalorder %s73, %s74
      %p86 = scmp.eq.s32.totalorder %s22, 1
      %p87 = por %p85, %p86
      %p89 = scmp.ne.s32.totalorder %s74, %s88
      %p90 = scmp.eq.s32.totalorder %s22, 0
      %p91 = por %p89, %p90
      %s92 = ssub.s32 %s16, %s23
      %p93 = scmp.eq.s32.totalorder %s92, 0
      %s95 = sadd.s32 %s94, 1
      %s96 = scalar_select %p93, %s94, %s95
      %p99 = pneg %p93
      %p100 = scmp.eq.s32.totalorder %s16, 1
      %p101 = por %p99, %p100
      %p102 = scmp.ne.s32.totalorder %s94, %s97
      %p103 = scmp.eq.s32.totalorder %s16, 0
      %p104 = por %p102, %p103
      %p105 = scmp.ne.s32.totalorder %s94, %s97
      %p106 = scmp.eq.s32.totalorder %s21, 1
      %p107 = por %p105, %p106
      %p108 = scmp.ne.s32.totalorder %s97, %s98
      %p109 = scmp.eq.s32.totalorder %s21, 0
      %p110 = por %p108, %p109
      %p111 = scmp.ne.s32.totalorder %s97, %s98
      %p112 = scmp.eq.s32.totalorder %s22, 1
      %p113 = por %p111, %p112
      %p115 = scmp.ne.s32.totalorder %s98, %s114
      %p116 = scmp.eq.s32.totalorder %s22, 0
      %p117 = por %p115, %p116
      %p118 = scmp.le.s32.totalorder 1, %s16
      %p119 = scmp.lt.s32.totalorder %s16, 3
      %p120 = pnand %p118, %p119
      %p121 = pneg %p120
      // Predicated region
      $region9: #{tpu_custom_call.1} parent=5 // pred_check
        _
      $region10: #{tpu_custom_call.1} parent=5 // pred_check_branch
        %123 = sbr.rel (%p120) target = $region12
      $region11: #{tpu_custom_call.1} parent=5 // pred_region
        %s124 = ssub.s32 %s16, 1
        // Predicated region
        $region13: #{tpu_custom_call.1} parent=11 // pred_check
          %p125 = pneg %p63
        $region14: #{tpu_custom_call.1} parent=11 // pred_check_branch
          %127 = sbr.rel (%p125) target = $region16
        $region15: #{tpu_custom_call.1} parent=11 // pred_region
          %s129 = ssub.s32 128, 128
          %130 = vsyncadd [#allocation7], %s129
          %s132 = sshll.u32 [#allocation6], 4
          %s133 = int_to_ptr.vmem [resolvable:$true] %s132
          %135 = dma.hbm_to_vmem [thread:$0]  %s1, 128, %s133, [#allocation7]
        $region16: #{tpu_custom_call.1} parent=11 // pred_fallthru
          _
        // Predicated region
        $region17: #{tpu_custom_call.1} parent=11 // pred_check
          %p136 = pneg %p84
        $region18: #{tpu_custom_call.1} parent=11 // pred_check_branch
          %138 = sbr.rel (%p136) target = $region20
        $region19: #{tpu_custom_call.1} parent=11 // pred_region
          %s140 = ssub.s32 128, 128
          %141 = vsyncadd [#allocation7], %s140
          %s143 = sshll.u32 [#allocation8], 4
          %s144 = int_to_ptr.vmem [resolvable:$true] %s143
          %146 = dma.hbm_to_vmem [thread:$0]  %s2, 128, %s144, [#allocation7]
        $region20: #{tpu_custom_call.1} parent=11 // pred_fallthru
          _
      $region12: #{tpu_custom_call.1} parent=5 // pred_fallthru
        _
      %p147 = scmp.lt.s32.totalorder %s16, 2
      // Predicated region
      $region21: #{tpu_custom_call.1} parent=5 // pred_check
        %p148 = pneg %p147
      $region22: #{tpu_custom_call.1} parent=5 // pred_check_branch
        %150 = sbr.rel (%p148) target = $region24
      $region23: #{tpu_custom_call.1} parent=5 // pred_region
        // Predicated region
        $region25: #{tpu_custom_call.1} parent=23 // pred_check
          %p151 = pneg %p36
        $region26: #{tpu_custom_call.1} parent=23 // pred_check_branch
          %153 = sbr.rel (%p151) target = $region28
        $region27: #{tpu_custom_call.1} parent=23 // pred_region
          %s154 = sand.u32 %s26, 1
          %s155 = scalar_lea.sflag [#allocation4], %s154
          %s156 = sand.u32 %s26, 1
          %s157 = smul.addr %s156, 16
          %s158 = scalar_lea.vmem [#allocation3], %s157
          %s160 = ssub.s32 256, 256
          %161 = vsyncadd %s155, %s160
          %s162 = smul.addr %s16, 2
          %s163 = smul.addr %s162, 128
          %s164 = scalar_lea.hbm %s0, %s163
          %s166 = sshll.u32 %s158, 4
          %s167 = int_to_ptr.vmem [resolvable:$true] %s166
          %169 = dma.hbm_to_vmem [thread:$0]  %s164, 256, %s167, %s155
        $region28: #{tpu_custom_call.1} parent=23 // pred_fallthru
          _
      $region24: #{tpu_custom_call.1} parent=5 // pred_fallthru
        _
      %p170 = scmp.le.s32.totalorder 1, %s16
      %p171 = scmp.lt.s32.totalorder %s16, 3
      %p172 = pnand %p170, %p171
      %p173 = pneg %p172
      // Predicated region
      $region29: #{tpu_custom_call.1} parent=5 // pred_check
        _
      $region30: #{tpu_custom_call.1} parent=5 // pred_check_branch
        %175 = sbr.rel (%p172) target = $region32
      $region31: #{tpu_custom_call.1} parent=5 // pred_region
        %s176 = ssub.s32 %s16, 1
        %s177 = sand.u32 %s29, 1
        %s178 = scalar_lea.sflag [#allocation4], %s177
        %s179 = sand.u32 %s29, 1
        %s180 = smul.addr %s179, 16
        %s181 = scalar_lea.vmem [#allocation3], %s180
        // Predicated region
        $region33: #{tpu_custom_call.1} parent=31 // pred_check
          %p182 = pneg %p42
        $region34: #{tpu_custom_call.1} parent=31 // pred_check_branch
          %184 = sbr.rel (%p182) target = $region36
        $region35: #{tpu_custom_call.1} parent=31 // pred_region
          %185 = dma.done %s178, 256
        $region36: #{tpu_custom_call.1} parent=31 // pred_fallthru
          _
        // Predicated region
        $region37: #{tpu_custom_call.1} parent=31 // pred_check
          %p186 = pneg %p63
        $region38: #{tpu_custom_call.1} parent=31 // pred_check_branch
          %188 = sbr.rel (%p186) target = $region40
        $region39: #{tpu_custom_call.1} parent=31 // pred_region
          %189 = dma.done [#allocation7], 128
        $region40: #{tpu_custom_call.1} parent=31 // pred_fallthru
          _
        // Predicated region
        $region41: #{tpu_custom_call.1} parent=31 // pred_check
          %p190 = pneg %p84
        $region42: #{tpu_custom_call.1} parent=31 // pred_check_branch
          %192 = sbr.rel (%p190) target = $region44
        $region43: #{tpu_custom_call.1} parent=31 // pred_region
          %193 = dma.done [#allocation7], 128
        $region44: #{tpu_custom_call.1} parent=31 // pred_fallthru
          _
        %s194 = sand.u32 %s29, 1
        %s195 = scalar_lea.sflag [#allocation4], %s194
        %s196 = sand.u32 %s29, 1
        %s197 = smul.addr %s196, 16
        %s198 = scalar_lea.vmem [#allocation3], %s197
        %p199 = pneg %p42
        %p200 = pneg %p39
        %p201 = pneg %p63
        %p202 = pneg %p60
        %p203 = pneg %p84
        %p204 = pneg %p81
        %p205 = pneg %p110
        %p206 = pneg %p107
        %s207 = sand.u32 %s97, 1
        %s208 = scalar_lea.sflag [#allocation5], %s207
        %s209 = sand.u32 %s97, 1
        %s210 = smul.addr %s209, 8
        %s211 = scalar_lea.vmem [#allocation9], %s210
        %v212 = vlaneseq
        %v213 = vand.u32 %v212, 127
        %v214 = vadd.s32 %v213, 128
        %vm215 = vcmp.lt.s32.totalorder %v213, 0
        %v216 = vsub.s32 0, %v213
        %v217 = vsel %vm215, %v216, %v213
        %v218 = vshrl.u32 %v217, 4
        %v219 = vand.u32 %v217, 15
        %v220 = vsub.s32 0, %v219
        %v221 = vsel %vm215, %v220, %v219
        %vm222 = vcmp.lt.s32.totalorder %v214, 0
        %v223 = vsub.s32 0, %v214
        %v224 = vsel %vm222, %v223, %v214
        %v225 = vshrl.u32 %v224, 4
        %v226 = vand.u32 %v224, 15
        %v227 = vsub.s32 0, %v226
        %v228 = vsel %vm222, %v227, %v226
        %vm229 = vcmp.ne.s32.totalorder %v221, 0
        %vm230 = vcmp.ne.s32.totalorder %v228, 0
        %vm231 = vcmp.lt.s32.totalorder %v221, 0
        %vm232 = vcmp.lt.s32.totalorder %v228, 0
        %vm233 = vmand %vm231, %vm229
        %vm234 = vmand %vm232, %vm230
        %v235 = vadd.s32 %v221, 16
        %v236 = vadd.s32 %v228, 16
        %v237 = vsel %vm233, %v235, %v221
        %v238 = vsel %vm234, %v236, %v228
        %vm239 = vcmp.ge.s32.totalorder %v237, 1
        %vm240 = vcmp.ge.s32.totalorder %v238, 1
        %vm241 = vcmp.le.s32.totalorder %v237, 14
        %vm242 = vcmp.le.s32.totalorder %v238, 14
        %v243 = vld [vmem:[%s181] sm:$0xff]
        %v244 = vld [vmem:[%s181 + $0x8] sm:$0xff]
        %247 = vrot.lane.b32.xlu0 %v243, 17
        %v248 = vpop.permute.xlu0 %247
        %249 = vrot.lane.b32.xlu0 %v244, 17
        %v250 = vpop.permute.xlu0 %249
        %vm251 = vcmask 138240
        %v252 = vsel %vm251, %v248, %v250
        %v256 = vsel %vm251, 0.0, %v248
        %v257 = vsel %vm251, %v250, 0.0
        %v258 = vsel %vm239, 1, 0
        %v259 = vsel %vm240, 1, 0
        %vm260 = vcmp.eq.s32.totalorder %v258, 1
        %vm261 = vcmp.eq.s32.totalorder %v259, 1
        %v262 = vsel %vm260, %v256, 0.0
        %v263 = vsel %vm261, %v252, 0.0
        %264 = vst [vmem:[#allocation2] sm:$0xff] %v262
        %265 = vst [vmem:[#allocation2 + $0x8] sm:$0xff] %v263
        %268 = vrot.lane.b32.xlu0 %v256, 127
        %v269 = vpop.permute.xlu0 %268
        %270 = vrot.lane.b32.xlu0 %v252, 127
        %v271 = vpop.permute.xlu0 %270
        %272 = vrot.lane.b32.xlu0 %v257, 127
        %v273 = vpop.permute.xlu0 %272
        %vm274 = vcmask 1039360
        %v275 = vsel %vm274, %v269, %v271
        %v276 = vsel %vm274, %v271, %v273
        %279 = vst [vmem:[#allocation2 + $0x10] sm:$0xff] %v275
        %280 = vst [vmem:[#allocation2 + $0x18] sm:$0xff] %v276
        %v281 = vsel %vm241, 1, 0
        %v282 = vsel %vm242, 1, 0
        %vm283 = vcmp.eq.s32.totalorder %v281, 1
        %vm284 = vcmp.eq.s32.totalorder %v282, 1
        %285 = vrot.lane.b32.xlu0 %v256, 126
        %v286 = vpop.permute.xlu0 %285
        %287 = vrot.lane.b32.xlu0 %v252, 126
        %v288 = vpop.permute.xlu0 %287
        %289 = vrot.lane.b32.xlu0 %v257, 126
        %v290 = vpop.permute.xlu0 %289
        %vm291 = vcmask 1031168
        %v292 = vsel %vm291, %v286, %v288
        %v293 = vsel %vm291, %v288, %v290
        %v296 = vsel %vm283, %v292, 0.0
        %v297 = vsel %vm284, %v293, 0.0
        %298 = vst [vmem:[#allocation2 + $0x20] sm:$0xff] %v296
        %299 = vst [vmem:[#allocation2 + $0x28] sm:$0xff] %v297
        %300 = vrot.lane.b32.xlu0 %v256, 112
        %v301 = vpop.permute.xlu0 %300
        %302 = vrot.lane.b32.xlu0 %v252, 112
        %v303 = vpop.permute.xlu0 %302
        %304 = vrot.lane.b32.xlu0 %v257, 112
        %v305 = vpop.permute.xlu0 %304
        %vm306 = vcmask 916480
        %v307 = vsel %vm306, %v301, %v303
        %v308 = vsel %vm306, %v303, %v305
        %v311 = vsel %vm260, %v307, 0.0
        %v312 = vsel %vm261, %v308, 0.0
        %313 = vst [vmem:[#allocation2 + $0x30] sm:$0xff] %v311
        %314 = vst [vmem:[#allocation2 + $0x38] sm:$0xff] %v312
        %315 = vrot.lane.b32.xlu0 %v256, 111
        %v316 = vpop.permute.xlu0 %315
        %317 = vrot.lane.b32.xlu0 %v252, 111
        %v318 = vpop.permute.xlu0 %317
        %319 = vrot.lane.b32.xlu0 %v257, 111
        %v320 = vpop.permute.xlu0 %319
        %vm321 = vcmask 908288
        %v322 = vsel %vm321, %v316, %v318
        %v323 = vsel %vm321, %v318, %v320
        %326 = vst [vmem:[#allocation2 + $0x40] sm:$0xff] %v322
        %327 = vst [vmem:[#allocation2 + $0x48] sm:$0xff] %v323
        %328 = vrot.lane.b32.xlu0 %v256, 110
        %v329 = vpop.permute.xlu0 %328
        %330 = vrot.lane.b32.xlu0 %v252, 110
        %v331 = vpop.permute.xlu0 %330
        %332 = vrot.lane.b32.xlu0 %v257, 110
        %v333 = vpop.permute.xlu0 %332
        %vm334 = vcmask 900096
        %v335 = vsel %vm334, %v329, %v331
        %v336 = vsel %vm334, %v331, %v333
        %v339 = vsel %vm283, %v335, 0.0
        %v340 = vsel %vm284, %v336, 0.0
        %341 = vst [vmem:[#allocation2 + $0x50] sm:$0xff] %v339
        %342 = vst [vmem:[#allocation2 + $0x58] sm:$0xff] %v340
        %343 = vrot.lane.b32.xlu0 %v256, 96
        %v344 = vpop.permute.xlu0 %343
        %345 = vrot.lane.b32.xlu0 %v252, 96
        %v346 = vpop.permute.xlu0 %345
        %347 = vrot.lane.b32.xlu0 %v257, 96
        %v348 = vpop.permute.xlu0 %347
        %vm349 = vcmask 785408
        %v350 = vsel %vm349, %v344, %v346
        %v351 = vsel %vm349, %v346, %v348
        %v354 = vsel %vm260, %v350, 0.0
        %v355 = vsel %vm261, %v351, 0.0
        %356 = vst [vmem:[#allocation2 + $0x60] sm:$0xff] %v354
        %357 = vst [vmem:[#allocation2 + $0x68] sm:$0xff] %v355
        %358 = vrot.lane.b32.xlu0 %v256, 95
        %v359 = vpop.permute.xlu0 %358
        %360 = vrot.lane.b32.xlu0 %v252, 95
        %v361 = vpop.permute.xlu0 %360
        %362 = vrot.lane.b32.xlu0 %v257, 95
        %v363 = vpop.permute.xlu0 %362
        %vm364 = vcmask 777216
        %v365 = vsel %vm364, %v359, %v361
        %v366 = vsel %vm364, %v361, %v363
        %369 = vst [vmem:[#allocation2 + $0x70] sm:$0xff] %v365
        %370 = vst [vmem:[#allocation2 + $0x78] sm:$0xff] %v366
        %371 = vrot.lane.b32.xlu0 %v256, 94
        %v372 = vpop.permute.xlu0 %371
        %373 = vrot.lane.b32.xlu0 %v252, 94
        %v374 = vpop.permute.xlu0 %373
        %375 = vrot.lane.b32.xlu0 %v257, 94
        %v376 = vpop.permute.xlu0 %375
        %vm377 = vcmask 769024
        %v378 = vsel %vm377, %v372, %v374
        %v379 = vsel %vm377, %v374, %v376
        %v382 = vsel %vm283, %v378, 0.0
        %v383 = vsel %vm284, %v379, 0.0
        %384 = vst [vmem:[#allocation2 + $0x80] sm:$0xff] %v382
        %385 = vst [vmem:[#allocation2 + $0x88] sm:$0xff] %v383
        %v386 = vld [vmem:[#allocation6] sm:$0xff]
        %v387 = vld [vmem:[#allocation2] sm:$0xff]
        %v388 = vld [vmem:[#allocation2 + $0x8] sm:$0xff]
        %v389 = vld [vmem:[#allocation2 + $0x10] sm:$0xff]
        %v390 = vld [vmem:[#allocation2 + $0x18] sm:$0xff]
        %v391 = vld [vmem:[#allocation2 + $0x20] sm:$0xff]
        %v392 = vld [vmem:[#allocation2 + $0x28] sm:$0xff]
        %v393 = vld [vmem:[#allocation2 + $0x30] sm:$0xff]
        %v394 = vld [vmem:[#allocation2 + $0x38] sm:$0xff]
        %v395 = vld [vmem:[#allocation2 + $0x40] sm:$0xff]
        %v396 = vld [vmem:[#allocation2 + $0x48] sm:$0xff]
        %v397 = vld [vmem:[#allocation2 + $0x50] sm:$0xff]
        %v398 = vld [vmem:[#allocation2 + $0x58] sm:$0xff]
        %v399 = vld [vmem:[#allocation2 + $0x60] sm:$0xff]
        %v400 = vld [vmem:[#allocation2 + $0x68] sm:$0xff]
        %v401 = vld [vmem:[#allocation2 + $0x70] sm:$0xff]
        %v402 = vld [vmem:[#allocation2 + $0x78] sm:$0xff]
        %v403 = vld [vmem:[#allocation2 + $0x80] sm:$0xff]
        %v404 = vld [vmem:[#allocation2 + $0x88] sm:$0xff]
        %vm405 = vcmask 588800
        %v407 = vsel %vm405, %v386, 0
        %409 = vmatprep.subr.mxu0 0.0
        %410 = vmatpush1.msra.mxu0 0.0
        %411 = vmatprep.subr.mxu0 0.0
        %412 = vmatpush1.msra.mxu0 0.0
        %413 = vmatprep.subr.mxu0 0.0
        %414 = vmatpush1.msra.mxu0 0.0
        %415 = vmatprep.subr.mxu0 0.0
        %416 = vmatpush1.msra.mxu0 0.0
        %417 = vmatprep.subr.mxu0 0.0
        %418 = vmatpush1.msra.mxu0 0.0
        %419 = vmatprep.subr.mxu0 0.0
        %420 = vmatpush1.msra.mxu0 0.0
        %421 = vmatprep.subr.mxu0 0.0
        %422 = vmatpush1.msra.mxu0 0.0
        %423 = vmatprep.subr.mxu0 %v404
        %424 = vmatpush1.msra.mxu0 %v403
        %425 = vmatprep.subr.mxu0 %v402
        %426 = vmatpush1.msra.mxu0 %v401
        %427 = vmatprep.subr.mxu0 %v400
        %428 = vmatpush1.msra.mxu0 %v399
        %429 = vmatprep.subr.mxu0 %v398
        %430 = vmatpush1.msra.mxu0 %v397
        %431 = vmatprep.subr.mxu0 %v396
        %432 = vmatpush1.msra.mxu0 %v395
        %433 = vmatprep.subr.mxu0 %v394
        %434 = vmatpush1.msra.mxu0 %v393
        %435 = vmatprep.subr.mxu0 %v392
        %436 = vmatpush1.msra.mxu0 %v391
        %437 = vmatprep.subr.mxu0 %v390
        %438 = vmatpush1.msra.mxu0 %v389
        %439 = vmatprep.subr.mxu0 %v388
        %440 = vmatpush1.msra.mxu0 %v387
        %441 = vmatprep.subr.mxu0 0.0
        %442 = vmatpush2.msra.mxu0 0.0
        %443 = vmatprep.subr.mxu0 0.0
        %444 = vmatpush2.msra.mxu0 0.0
        %445 = vmatprep.subr.mxu0 0.0
        %446 = vmatpush2.msra.mxu0 0.0
        %447 = vmatprep.subr.mxu0 0.0
        %448 = vmatpush2.msra.mxu0 0.0
        %449 = vmatprep.subr.mxu0 0.0
        %450 = vmatpush2.msra.mxu0 0.0
        %451 = vmatprep.subr.mxu0 0.0
        %452 = vmatpush2.msra.mxu0 0.0
        %453 = vmatprep.subr.mxu0 0.0
        %454 = vmatpush2.msra.mxu0 0.0
        %455 = vmatprep.subr.mxu0 0.0
        %456 = vmatpush2.msra.mxu0 0.0
        %457 = vmatprep.subr.mxu0 0.0
        %458 = vmatpush2.msra.mxu0 0.0
        %459 = vmatprep.subr.mxu0 0.0
        %460 = vmatpush2.msra.mxu0 0.0
        %461 = vmatprep.subr.mxu0 0.0
        %462 = vmatpush2.msra.mxu0 0.0
        %463 = vmatprep.subr.mxu0 0.0
        %464 = vmatpush2.msra.mxu0 0.0
        %465 = vmatprep.subr.mxu0 0.0
        %466 = vmatpush2.msra.mxu0 0.0
        %467 = vmatprep.subr.mxu0 0.0
        %468 = vmatpush2.msra.mxu0 0.0
        %469 = vmatprep.subr.mxu0 0.0
        %470 = vmatpush2.msra.mxu0 0.0
        %471 = vmatprep.subr.mxu0 0.0
        %472 = vmatpush2.msra.mxu0 0.0
        %473 = vmatprep.mubr.f32.mxu0 0.0
        %474 = vmatmul.mubr.f32.gmra.mxu0 %v407
        %v475 = vpop.f32.mrf.mxu0
        %v476 = vadd.f32 0.0, %v475
        %v477 = vpop.f32.mrf.mxu0
        %v478 = vadd.f32 0.0, %v477
        %479 = vdwg.mxu0
        %v480 = vadd.f32 %v476, %v478
        %481 = vadd.xlane.f32.xlu0 %v480
        %v482 = vpop.xlane.xlu0 %481
        %v483 = vrcp.pop 256.0
        %v484 = vmul.f32 %v482, %v483
        %v485 = vsub.f32 %v476, %v484
        %v486 = vsub.f32 %v478, %v484
        %v487 = vmul.f32 %v485, %v485
        %v488 = vmul.f32 %v486, %v486
        %v489 = vadd.f32 %v487, %v488
        %490 = vadd.xlane.f32.xlu0 %v489
        %v491 = vpop.xlane.xlu0 %490
        %v492 = vmul.f32 %v491, %v483
        %v493 = vadd.f32 %v492, 1e-05
        %v494 = vrsqrt.pop %v493
        %v495 = vmul.f32 %v485, %v494
        %v496 = vmul.f32 %v486, %v494
        %v497 = vmax.f32 %v495, 0.0
        %v498 = vmax.f32 %v496, 0.0
        %501 = vrot.lane.b32.xlu0 %v497, 17
        %v502 = vpop.permute.xlu0 %501
        %503 = vrot.lane.b32.xlu0 %v498, 17
        %v504 = vpop.permute.xlu0 %503
        %v505 = vsel %vm251, %v502, %v504
        %v509 = vsel %vm251, 0.0, %v502
        %v510 = vsel %vm251, %v504, 0.0
        %v511 = vsel %vm260, %v509, 0.0
        %v512 = vsel %vm261, %v505, 0.0
        %513 = vst [vmem:[#allocation2] sm:$0xff] %v511
        %514 = vst [vmem:[#allocation2 + $0x8] sm:$0xff] %v512
        %517 = vrot.lane.b32.xlu0 %v509, 127
        %v518 = vpop.permute.xlu0 %517
        %519 = vrot.lane.b32.xlu0 %v505, 127
        %v520 = vpop.permute.xlu0 %519
        %521 = vrot.lane.b32.xlu0 %v510, 127
        %v522 = vpop.permute.xlu0 %521
        %v523 = vsel %vm274, %v518, %v520
        %v524 = vsel %vm274, %v520, %v522
        %527 = vst [vmem:[#allocation2 + $0x10] sm:$0xff] %v523
        %528 = vst [vmem:[#allocation2 + $0x18] sm:$0xff] %v524
        %529 = vrot.lane.b32.xlu0 %v509, 126
        %v530 = vpop.permute.xlu0 %529
        %531 = vrot.lane.b32.xlu0 %v505, 126
        %v532 = vpop.permute.xlu0 %531
        %533 = vrot.lane.b32.xlu0 %v510, 126
        %v534 = vpop.permute.xlu0 %533
        %v535 = vsel %vm291, %v530, %v532
        %v536 = vsel %vm291, %v532, %v534
        %v539 = vsel %vm283, %v535, 0.0
        %v540 = vsel %vm284, %v536, 0.0
        %541 = vst [vmem:[#allocation2 + $0x20] sm:$0xff] %v539
        %542 = vst [vmem:[#allocation2 + $0x28] sm:$0xff] %v540
        %543 = vrot.lane.b32.xlu0 %v509, 112
        %v544 = vpop.permute.xlu0 %543
        %545 = vrot.lane.b32.xlu0 %v505, 112
        %v546 = vpop.permute.xlu0 %545
        %547 = vrot.lane.b32.xlu0 %v510, 112
        %v548 = vpop.permute.xlu0 %547
        %v549 = vsel %vm306, %v544, %v546
        %v550 = vsel %vm306, %v546, %v548
        %v553 = vsel %vm260, %v549, 0.0
        %v554 = vsel %vm261, %v550, 0.0
        %555 = vst [vmem:[#allocation2 + $0x30] sm:$0xff] %v553
        %556 = vst [vmem:[#allocation2 + $0x38] sm:$0xff] %v554
        %557 = vrot.lane.b32.xlu0 %v509, 111
        %v558 = vpop.permute.xlu0 %557
        %559 = vrot.lane.b32.xlu0 %v505, 111
        %v560 = vpop.permute.xlu0 %559
        %561 = vrot.lane.b32.xlu0 %v510, 111
        %v562 = vpop.permute.xlu0 %561
        %v563 = vsel %vm321, %v558, %v560
        %v564 = vsel %vm321, %v560, %v562
        %567 = vst [vmem:[#allocation2 + $0x40] sm:$0xff] %v563
        %568 = vst [vmem:[#allocation2 + $0x48] sm:$0xff] %v564
        %569 = vrot.lane.b32.xlu0 %v509, 110
        %v570 = vpop.permute.xlu0 %569
        %571 = vrot.lane.b32.xlu0 %v505, 110
        %v572 = vpop.permute.xlu0 %571
        %573 = vrot.lane.b32.xlu0 %v510, 110
        %v574 = vpop.permute.xlu0 %573
        %v575 = vsel %vm334, %v570, %v572
        %v576 = vsel %vm334, %v572, %v574
        %v579 = vsel %vm283, %v575, 0.0
        %v580 = vsel %vm284, %v576, 0.0
        %581 = vst [vmem:[#allocation2 + $0x50] sm:$0xff] %v579
        %582 = vst [vmem:[#allocation2 + $0x58] sm:$0xff] %v580
        %583 = vrot.lane.b32.xlu0 %v509, 96
        %v584 = vpop.permute.xlu0 %583
        %585 = vrot.lane.b32.xlu0 %v505, 96
        %v586 = vpop.permute.xlu0 %585
        %587 = vrot.lane.b32.xlu0 %v510, 96
        %v588 = vpop.permute.xlu0 %587
        %v589 = vsel %vm349, %v584, %v586
        %v590 = vsel %vm349, %v586, %v588
        %v593 = vsel %vm260, %v589, 0.0
        %v594 = vsel %vm261, %v590, 0.0
        %595 = vst [vmem:[#allocation2 + $0x60] sm:$0xff] %v593
        %596 = vst [vmem:[#allocation2 + $0x68] sm:$0xff] %v594
        %597 = vrot.lane.b32.xlu0 %v509, 95
        %v598 = vpop.permute.xlu0 %597
        %599 = vrot.lane.b32.xlu0 %v505, 95
        %v600 = vpop.permute.xlu0 %599
        %601 = vrot.lane.b32.xlu0 %v510, 95
        %v602 = vpop.permute.xlu0 %601
        %v603 = vsel %vm364, %v598, %v600
        %v604 = vsel %vm364, %v600, %v602
        %607 = vst [vmem:[#allocation2 + $0x70] sm:$0xff] %v603
        %608 = vst [vmem:[#allocation2 + $0x78] sm:$0xff] %v604
        %609 = vrot.lane.b32.xlu0 %v509, 94
        %v610 = vpop.permute.xlu0 %609
        %611 = vrot.lane.b32.xlu0 %v505, 94
        %v612 = vpop.permute.xlu0 %611
        %613 = vrot.lane.b32.xlu0 %v510, 94
        %v614 = vpop.permute.xlu0 %613
        %v615 = vsel %vm377, %v610, %v612
        %v616 = vsel %vm377, %v612, %v614
        %v619 = vsel %vm283, %v615, 0.0
        %v620 = vsel %vm284, %v616, 0.0
        %621 = vst [vmem:[#allocation2 + $0x80] sm:$0xff] %v619
        %622 = vst [vmem:[#allocation2 + $0x88] sm:$0xff] %v620
        %v623 = vld [vmem:[#allocation8] sm:$0xff]
        %v624 = vld [vmem:[#allocation2] sm:$0xff]
        %v625 = vld [vmem:[#allocation2 + $0x8] sm:$0xff]
        %v626 = vld [vmem:[#allocation2 + $0x10] sm:$0xff]
        %v627 = vld [vmem:[#allocation2 + $0x18] sm:$0xff]
        %v628 = vld [vmem:[#allocation2 + $0x20] sm:$0xff]
        %v629 = vld [vmem:[#allocation2 + $0x28] sm:$0xff]
        %v630 = vld [vmem:[#allocation2 + $0x30] sm:$0xff]
        %v631 = vld [vmem:[#allocation2 + $0x38] sm:$0xff]
        %v632 = vld [vmem:[#allocation2 + $0x40] sm:$0xff]
        %v633 = vld [vmem:[#allocation2 + $0x48] sm:$0xff]
        %v634 = vld [vmem:[#allocation2 + $0x50] sm:$0xff]
        %v635 = vld [vmem:[#allocation2 + $0x58] sm:$0xff]
        %v636 = vld [vmem:[#allocation2 + $0x60] sm:$0xff]
        %v637 = vld [vmem:[#allocation2 + $0x68] sm:$0xff]
        %v638 = vld [vmem:[#allocation2 + $0x70] sm:$0xff]
        %v639 = vld [vmem:[#allocation2 + $0x78] sm:$0xff]
        %v640 = vld [vmem:[#allocation2 + $0x80] sm:$0xff]
        %v641 = vld [vmem:[#allocation2 + $0x88] sm:$0xff]
        %v643 = vsel %vm405, %v623, 0
        %645 = vmatprep.subr.mxu0 0.0
        %646 = vmatpush1.msra.mxu0 0.0
        %647 = vmatprep.subr.mxu0 0.0
        %648 = vmatpush1.msra.mxu0 0.0
        %649 = vmatprep.subr.mxu0 0.0
        %650 = vmatpush1.msra.mxu0 0.0
        %651 = vmatprep.subr.mxu0 0.0
        %652 = vmatpush1.msra.mxu0 0.0
        %653 = vmatprep.subr.mxu0 0.0
        %654 = vmatpush1.msra.mxu0 0.0
        %655 = vmatprep.subr.mxu0 0.0
        %656 = vmatpush1.msra.mxu0 0.0
        %657 = vmatprep.subr.mxu0 0.0
        %658 = vmatpush1.msra.mxu0 0.0
        %659 = vmatprep.subr.mxu0 %v641
        %660 = vmatpush1.msra.mxu0 %v640
        %661 = vmatprep.subr.mxu0 %v639
        %662 = vmatpush1.msra.mxu0 %v638
        %663 = vmatprep.subr.mxu0 %v637
        %664 = vmatpush1.msra.mxu0 %v636
        %665 = vmatprep.subr.mxu0 %v635
        %666 = vmatpush1.msra.mxu0 %v634
        %667 = vmatprep.subr.mxu0 %v633
        %668 = vmatpush1.msra.mxu0 %v632
        %669 = vmatprep.subr.mxu0 %v631
        %670 = vmatpush1.msra.mxu0 %v630
        %671 = vmatprep.subr.mxu0 %v629
        %672 = vmatpush1.msra.mxu0 %v628
        %673 = vmatprep.subr.mxu0 %v627
        %674 = vmatpush1.msra.mxu0 %v626
        %675 = vmatprep.subr.mxu0 %v625
        %676 = vmatpush1.msra.mxu0 %v624
        %677 = vmatprep.subr.mxu0 0.0
        %678 = vmatpush2.msra.mxu0 0.0
        %679 = vmatprep.subr.mxu0 0.0
        %680 = vmatpush2.msra.mxu0 0.0
        %681 = vmatprep.subr.mxu0 0.0
        %682 = vmatpush2.msra.mxu0 0.0
        %683 = vmatprep.subr.mxu0 0.0
        %684 = vmatpush2.msra.mxu0 0.0
        %685 = vmatprep.subr.mxu0 0.0
        %686 = vmatpush2.msra.mxu0 0.0
        %687 = vmatprep.subr.mxu0 0.0
        %688 = vmatpush2.msra.mxu0 0.0
        %689 = vmatprep.subr.mxu0 0.0
        %690 = vmatpush2.msra.mxu0 0.0
        %691 = vmatprep.subr.mxu0 0.0
        %692 = vmatpush2.msra.mxu0 0.0
        %693 = vmatprep.subr.mxu0 0.0
        %694 = vmatpush2.msra.mxu0 0.0
        %695 = vmatprep.subr.mxu0 0.0
        %696 = vmatpush2.msra.mxu0 0.0
        %697 = vmatprep.subr.mxu0 0.0
        %698 = vmatpush2.msra.mxu0 0.0
        %699 = vmatprep.subr.mxu0 0.0
        %700 = vmatpush2.msra.mxu0 0.0
        %701 = vmatprep.subr.mxu0 0.0
        %702 = vmatpush2.msra.mxu0 0.0
        %703 = vmatprep.subr.mxu0 0.0
        %704 = vmatpush2.msra.mxu0 0.0
        %705 = vmatprep.subr.mxu0 0.0
        %706 = vmatpush2.msra.mxu0 0.0
        %707 = vmatprep.subr.mxu0 0.0
        %708 = vmatpush2.msra.mxu0 0.0
        %709 = vmatprep.mubr.f32.mxu0 0.0
        %710 = vmatmul.mubr.f32.gmra.mxu0 %v643
        %v711 = vpop.f32.mrf.mxu0
        %v712 = vadd.f32 0.0, %v711
        %v713 = vpop.f32.mrf.mxu0
        %v714 = vadd.f32 0.0, %v713
        %715 = vdwg.mxu0
        %v716 = vadd.f32 %v712, %v714
        %717 = vadd.xlane.f32.xlu0 %v716
        %v718 = vpop.xlane.xlu0 %717
        %v719 = vmul.f32 %v718, %v483
        %v720 = vsub.f32 %v712, %v719
        %v721 = vsub.f32 %v714, %v719
        %v722 = vmul.f32 %v720, %v720
        %v723 = vmul.f32 %v721, %v721
        %v724 = vadd.f32 %v722, %v723
        %725 = vadd.xlane.f32.xlu0 %v724
        %v726 = vpop.xlane.xlu0 %725
        %v727 = vmul.f32 %v726, %v483
        %v728 = vadd.f32 %v727, 1e-05
        %v729 = vrsqrt.pop %v728
        %v730 = vmul.f32 %v720, %v729
        %v731 = vmul.f32 %v721, %v729
        %v732 = vmax.f32 %v730, 0.0
        %v733 = vmax.f32 %v731, 0.0
        %v734 = vld [vmem:[%s181] sm:$0xf]
        %v735 = vld [vmem:[%s181 + $0x8] sm:$0xf]
        %v736 = vadd.f32 %v732, %v734
        %v737 = vadd.f32 %v733, %v735
        %v740 = vcombine.low %v736, %v737
        %742 = vst [vmem:[%s211] sm:$0xff] %v740
        %s743 = sand.u32 %s97, 1
        %s744 = scalar_lea.sflag [#allocation5], %s743
        %s745 = sand.u32 %s97, 1
        %s746 = smul.addr %s745, 8
        %s747 = scalar_lea.vmem [#allocation9], %s746
        // Predicated region
        $region45: #{tpu_custom_call.1} parent=31 // pred_check
          %p748 = pneg %p107
        $region46: #{tpu_custom_call.1} parent=31 // pred_check_branch
          %750 = sbr.rel (%p748) target = $region48
        $region47: #{tpu_custom_call.1} parent=31 // pred_region
          %s752 = ssub.s32 128, 128
          %753 = vsyncadd %s744, %s752
          %s754 = smul.addr %s21, 2
          %s755 = smul.addr %s754, 64
          %s756 = scalar_lea.hbm %s3, %s755
          %s758 = sshll.u32 %s747, 4
          %s759 = int_to_ptr.vmem [resolvable:$true] %s758
          %761 = dma.vmem_to_hbm [thread:$0]  %s759, 128, %s756, %s744
        $region48: #{tpu_custom_call.1} parent=31 // pred_fallthru
          _
      $region32: #{tpu_custom_call.1} parent=5 // pred_fallthru
        _
      %p762 = scmp.le.s32.totalorder 2, %s16
      // Predicated region
      $region49: #{tpu_custom_call.1} parent=5 // pred_check
        %p763 = pneg %p762
      $region50: #{tpu_custom_call.1} parent=5 // pred_check_branch
        %765 = sbr.rel (%p763) target = $region52
      $region51: #{tpu_custom_call.1} parent=5 // pred_region
        %s766 = ssub.s32 %s16, 2
        // Predicated region
        $region53: #{tpu_custom_call.1} parent=51 // pred_check
          %p767 = pneg %p113
        $region54: #{tpu_custom_call.1} parent=51 // pred_check_branch
          %769 = sbr.rel (%p767) target = $region56
        $region55: #{tpu_custom_call.1} parent=51 // pred_region
          %s770 = sand.u32 %s98, 1
          %s771 = scalar_lea.sflag [#allocation5], %s770
          %s772 = sand.u32 %s98, 1
          %s773 = smul.addr %s772, 8
          %s774 = scalar_lea.vmem [#allocation9], %s773
          %775 = dma.done %s771, 128
        $region56: #{tpu_custom_call.1} parent=51 // pred_fallthru
          _
      $region52: #{tpu_custom_call.1} parent=5 // pred_fallthru
        _
    $region6: #{tpu_custom_call.1} parent=1 // loop_footer
      %s20 = sadd.s32 1, %s16
    $region7: #{tpu_custom_call.1} parent=1 // loop_footer_branch
      %15 = sbr.rel target = $region3
    $region8: #{tpu_custom_call.1} parent=1 // loop_exit
      _
    %776 = vsyncpa [#allocation4], 1
    %s777 = scalar_lea.sflag [#allocation4], 1
    %778 = vsyncpa %s777, 1
    %779 = vsyncpa [#allocation7], 1
    %780 = vsyncpa [#allocation5], 1
    %s781 = scalar_lea.sflag [#allocation5], 1
    %782 = vsyncpa %s781, 1

</llo_original>
